<compile_context>
chip_gen: v5e
topology: v5e:2x2
jax: 0.10.0
libtpu: 0.0.40
codegen_flags: <defaults>
</compile_context>

<pallas_src>
import functools

import jax
import jax.numpy as jnp
from jax import lax
from jax.experimental import pallas as pl
from jax.experimental.pallas import tpu as pltpu


def _round_up(x, m):
    return ((x + m - 1) // m) * m


def _tokenizer_kernel(xT_ref, w_ref, b_ref, g_ref, out_ref):
    # xT_ref: (D, TN)  bf16   pre-transposed input rows (lane-dense)
    # w_ref:  (Vp, D)  bf16   nn.Linear weight (PyTorch layout), vocab padded to Vp
    # b_ref:  (Vp, 1)  f32    bias column (padded classes = -1e30, never win)
    # g_ref:  (Vp, TN) f32    standard Gumbel noise for this tile
    # out_ref:(1, TN)  i32    lane-dense row of token indices
    vp = w_ref.shape[0]

    # logits^T[v, n] = sum_d W[v, d] * x^T[d, n]   (canonical MXU shape, f32 accumulation)
    logits = lax.dot_general(
        w_ref[...], xT_ref[...],
        dimension_numbers=(((1,), (0,)), ((), ())),
        preferred_element_type=jnp.float32)              # (Vp, TN)

    # tau = 1 and softmax are strictly monotonic per row -> argmax directly on z.
    z = logits + b_ref[...] + g_ref[...]                 # bias bcast over lanes + Gumbel

    # First-occurrence argmax over the (sublane) vocab axis, entirely in int32.
    m = jnp.max(z, axis=0, keepdims=True)                # (1, TN)
    ids = lax.broadcasted_iota(jnp.int32, z.shape, 0)    # (Vp, TN) int32
    idx = jnp.min(jnp.where(z >= m, ids, jnp.int32(vp)),
                  axis=0, keepdims=True)                 # (1, TN) int32
    out_ref[...] = idx


def prepare_tokenizer_params(weight, bias):
    """One-time parameter prep (pad vocab to a lane multiple, cast W to bf16)."""
    vocab, _ = weight.shape
    vp = _round_up(vocab, 128)
    w = weight
    b = bias.astype(jnp.float32)
    if vp != vocab:
        w = jnp.pad(w, ((0, vp - vocab), (0, 0)))
        b = jnp.pad(b, (0, vp - vocab), constant_values=-1e30)  # padded classes never win
    return w.astype(jnp.bfloat16), b.reshape(vp, 1)


def _choose_tile(n, row_tile):
    """Pick a lane tile (multiple of 128) and padded row count; prefer >= 2 grid steps."""
    n128 = _round_up(max(n, 1), 128)
    if n128 > row_tile:
        tn = row_tile
    elif n128 <= 128:
        tn = n128
    else:
        tn = _round_up(n128 // 2, 128)   # split so v7x megacore can shard across both TCs
    n_pad = _round_up(n128, tn)
    return tn, n_pad


@functools.partial(jax.jit, static_argnames=("row_tile",))
def tokenizer_forward(x, w_prepped, b_prepped, key, *, row_tile=512):
    """TimeMAE Tokenizer.forward.

    x:          (bs, length, rep_dim) float
    w_prepped:  (Vp, rep_dim) bf16  -- from prepare_tokenizer_params
    b_prepped:  (Vp, 1) f32         -- from prepare_tokenizer_params
    key:        jax PRNG key for the Gumbel noise
    returns     (bs, length) int32 token indices
    """
    bs, length, dim = x.shape
    vp = w_prepped.shape[0]
    n = bs * length

    tn, n_pad = _choose_tile(n, row_tile)
    grid = n_pad // tn

    # Pre-transpose + cast x so the kernel's MXU contraction needs no in-kernel transpose.
    xT = x.reshape(n, dim).astype(jnp.bfloat16).T        # (dim, n)
    if n_pad != n:
        xT = jnp.pad(xT, ((0, 0), (0, n_pad - n)))

    # Standard Gumbel noise (same distribution as F.gumbel_softmax), already transposed.
    g = jax.random.gumbel(key, (vp, n_pad), dtype=jnp.float32)

    out = pl.pallas_call(
        _tokenizer_kernel,
        out_shape=jax.ShapeDtypeStruct((grid, tn), jnp.int32),
        grid_spec=pltpu.PrefetchScalarGridSpec(
            num_scalar_prefetch=0,
            grid=(grid,),
            in_specs=[
                pl.BlockSpec((dim, tn), lambda i: (0, i)),   # x^T tile (pipelined)
                pl.BlockSpec((vp, dim), lambda i: (0, 0)),   # W resident across tiles
                pl.BlockSpec((vp, 1), lambda i: (0, 0)),     # bias resident
                pl.BlockSpec((vp, tn), lambda i: (0, i)),    # Gumbel noise tile
            ],
            out_specs=pl.BlockSpec((1, tn), lambda i: (i, 0)),
        ),
        compiler_params=pltpu.CompilerParams(
            dimension_semantics=("parallel",)),
    )(xT, w_prepped, b_prepped, g)

    # (grid, tn) row-major == row order of the flattened input.
    return out.reshape(n_pad)[:n].reshape(bs, length)


if __name__ == "__main__":
    # Small shapes consistent with Tokenizer: (bs, length, rep_dim) -> (bs, length)
    bs, length, rep_dim, vocab_size = 2, 8, 32, 128

    key = jax.random.PRNGKey(0)
    kx, kw, kb, kg = jax.random.split(key, 4)

    x = jax.random.normal(kx, (bs, length, rep_dim), dtype=jnp.float32)
    # Deterministic param init (mimics nn.Linear uniform(-1/sqrt(fan_in), 1/sqrt(fan_in)))
    bound = 1.0 / jnp.sqrt(jnp.float32(rep_dim))
    w = jax.random.uniform(kw, (vocab_size, rep_dim), jnp.float32, -bound, bound)
    b = jax.random.uniform(kb, (vocab_size,), jnp.float32, -bound, bound)

    w_p, b_p = prepare_tokenizer_params(w, b)          # one-time, hoisted out of the call path
    indexes = tokenizer_forward(x, w_p, b_p, kg)
    jax.block_until_ready(indexes)

    assert indexes.shape == (bs, length)
    assert indexes.dtype == jnp.int32
    assert bool(jnp.all((indexes >= 0) & (indexes < vocab_size)))

    print("KERNEL_OK")
</pallas_src>

<mosaic_0001>
module attributes {stable_mosaic.version = 11 : i64} {
  func.func @_tokenizer_kernel(%arg0: i32, %arg1: memref<32x128xbf16, #tpu.memory_space<vmem>>, %arg2: memref<128x32xbf16, #tpu.memory_space<vmem>>, %arg3: memref<128x1xf32, #tpu.memory_space<vmem>>, %arg4: memref<128x128xf32, #tpu.memory_space<vmem>>, %arg5: memref<1x128xi32, #tpu.memory_space<vmem>>) attributes {dimension_semantics = [#tpu.dimension_semantics<parallel>], iteration_bounds = array<i64: 1>, scalar_prefetch = 0 : i64, scratch_operands = 0 : i64, tpu.core_type = #tpu.core_type<tc>, window_params = [{transform_indices = @transform_0, window_bounds = array<i64: 32, 128>}, {pipeline_mode = #tpu.pipeline_mode<synchronous>, transform_indices = @transform_1, window_bounds = array<i64: 128, 32>}, {pipeline_mode = #tpu.pipeline_mode<synchronous>, transform_indices = @transform_2, window_bounds = array<i64: 128, 1>}, {transform_indices = @transform_3, window_bounds = array<i64: 128, 128>}, {transform_indices = @transform_4, window_bounds = array<i64: 1, 128>}]} {
    %c0 = arith.constant 0 : index
    %c0_0 = arith.constant 0 : index
    %0 = vector.load %arg2[%c0, %c0_0] : memref<128x32xbf16, #tpu.memory_space<vmem>>, vector<128x32xbf16>
    %c0_1 = arith.constant 0 : index
    %c0_2 = arith.constant 0 : index
    %1 = vector.load %arg1[%c0_1, %c0_2] : memref<32x128xbf16, #tpu.memory_space<vmem>>, vector<32x128xbf16>
    %cst = arith.constant dense<0.000000e+00> : vector<128x128xf32>
    %2 = tpu.matmul %0, %1, %cst {dimension_numbers = #tpu.dot_dimension_numbers<[1], [0], [0], [1], [0, 0, 1, 1], [], []>} : vector<128x32xbf16>, vector<32x128xbf16>, vector<128x128xf32> -> vector<128x128xf32>
    %c0_3 = arith.constant 0 : index
    %c0_4 = arith.constant 0 : index
    %3 = vector.load %arg3[%c0_3, %c0_4] : memref<128x1xf32, #tpu.memory_space<vmem>>, vector<128x1xf32>
    %4 = vector.broadcast %3 : vector<128x1xf32> to vector<128x128xf32>
    %5 = arith.addf %2, %4 : vector<128x128xf32>
    %c0_5 = arith.constant 0 : index
    %c0_6 = arith.constant 0 : index
    %6 = vector.load %arg4[%c0_5, %c0_6] : memref<128x128xf32, #tpu.memory_space<vmem>>, vector<128x128xf32>
    %7 = arith.addf %5, %6 : vector<128x128xf32>
    %cst_7 = arith.constant dense<0xFF800000> : vector<128xf32>
    %8 = vector.multi_reduction <maximumf>, %7, %cst_7 [0] : vector<128x128xf32> to vector<128xf32>
    %9 = vector.shape_cast %8 : vector<128xf32> to vector<1x128xf32>
    %10 = tpu.iota {dimensions = array<i32: 0>} : vector<128x128xi32>
    %11 = vector.broadcast %9 : vector<1x128xf32> to vector<128x128xf32>
    %12 = arith.cmpf oge, %7, %11 : vector<128x128xf32>
    %c128_i32 = arith.constant 128 : i32
    %13 = vector.broadcast %c128_i32 : i32 to vector<128x128xi32>
    %14 = arith.select %12, %10, %13 : vector<128x128xi1>, vector<128x128xi32>
    %cst_8 = arith.constant dense<2147483647> : vector<128xi32>
    %15 = vector.multi_reduction <minsi>, %14, %cst_8 [0] : vector<128x128xi32> to vector<128xi32>
    %16 = vector.shape_cast %15 : vector<128xi32> to vector<1x128xi32>
    %c0_9 = arith.constant 0 : index
    %c0_10 = arith.constant 0 : index
    %17 = vector.load %arg5[%c0_9, %c0_10] : memref<1x128xi32, #tpu.memory_space<vmem>>, vector<1x128xi32>
    tpu.vector_store %arg5[%c0_9, %c0_10], %16 {strides = array<i32>} : memref<1x128xi32, #tpu.memory_space<vmem>>, vector<1x128xi32>,
    return
  }
  func.func @transform_0(%arg0: i32) -> (i32, i32) {
    %c0_i32 = arith.constant 0 : i32
    %c0_i32_0 = arith.constant 0 : i32
    return %c0_i32, %arg0 : i32, i32
  }
  func.func @transform_1(%arg0: i32) -> (i32, i32) {
    %c0_i32 = arith.constant 0 : i32
    %c0_i32_0 = arith.constant 0 : i32
    %c0_i32_1 = arith.constant 0 : i32
    return %c0_i32, %c0_i32_0 : i32, i32
  }
  func.func @transform_2(%arg0: i32) -> (i32, i32) {
    %c0_i32 = arith.constant 0 : i32
    %c0_i32_0 = arith.constant 0 : i32
    %c0_i32_1 = arith.constant 0 : i32
    return %c0_i32, %c0_i32_0 : i32, i32
  }
  func.func @transform_3(%arg0: i32) -> (i32, i32) {
    %c0_i32 = arith.constant 0 : i32
    %c0_i32_0 = arith.constant 0 : i32
    return %c0_i32, %arg0 : i32, i32
  }
  func.func @transform_4(%arg0: i32) -> (i32, i32) {
    %c0_i32 = arith.constant 0 : i32
    %c0_i32_0 = arith.constant 0 : i32
    return %arg0, %c0_i32 : i32, i32
  }
}

</mosaic_0001>

<llo_original>
// kernel: tokenizer_forward.1
$region0: #{tokenizer_forward.1}
  #allocation0 [shape = 'u32[]', space=smem, size = 0x4, offset = 0x4, fixed_abs, tag = 'smem constant byte address 0x4 - core index']
  #allocation1 [shape = 'u32[72,128]{1,0:T(1,128)}', space=vmem, size = 0x9000, scoped, tag = 'internal scratch']
  %s0 = inlined_call_operand.vmem [shape: bf16[32,128], index: 0, kind: input, shape index: {}]
  %s1 = inlined_call_operand.vmem [shape: bf16[128,32], index: 1, kind: input, shape index: {}]
  %s2 = inlined_call_operand.vmem [shape: f32[128,1], index: 2, kind: input, shape index: {}]
  %s3 = inlined_call_operand.vmem [shape: f32[128,128], index: 3, kind: input, shape index: {}]
  %s4 = inlined_call_operand.vmem [shape: s32[1,128], index: 4, kind: output, shape index: {}]
  %s5 = sld [smem:[#allocation0]]
  $region26: #{tokenizer_forward.1} parent=0
    _
  %s7 = ssub.s32 1, %s5
  %s8 = scalar_select 0, %s7, %s5
  // Predicated region
  $region2: #{tokenizer_forward.1} parent=0 // pred_check
    _
  $region3: #{tokenizer_forward.1} parent=0 // pred_check_branch
    %10 = sbr.rel (0) target = $region5
  $region4: #{tokenizer_forward.1} parent=0 // pred_region
    _
  $region5: #{tokenizer_forward.1} parent=0 // pred_fallthru
    _
  // Predicated region
  $region6: #{tokenizer_forward.1} parent=0 // pred_check
    _
  $region7: #{tokenizer_forward.1} parent=0 // pred_check_branch
    %12 = sbr.rel (0) target = $region9
  $region8: #{tokenizer_forward.1} parent=0 // pred_region
    _
  $region9: #{tokenizer_forward.1} parent=0 // pred_fallthru
    _
  // Predicated region
  $region10: #{tokenizer_forward.1} parent=0 // pred_check
    _
  $region11: #{tokenizer_forward.1} parent=0 // pred_check_branch
    %14 = sbr.rel (0) target = $region13
  $region12: #{tokenizer_forward.1} parent=0 // pred_region
    _
  $region13: #{tokenizer_forward.1} parent=0 // pred_fallthru
    _
  // Predicated region
  $region14: #{tokenizer_forward.1} parent=0 // pred_check
    _
  $region15: #{tokenizer_forward.1} parent=0 // pred_check_branch
    %16 = sbr.rel (0) target = $region17
  $region16: #{tokenizer_forward.1} parent=0 // pred_region
    _
  $region17: #{tokenizer_forward.1} parent=0 // pred_fallthru
    _
  %v18 = vld [vmem:[%s1] sm:$0xf]
  %v19 = vld [vmem:[%s1 + $0x4] sm:$0xf]
  %v20 = vld [vmem:[%s1 + $0x8] sm:$0xf]
  %v21 = vld [vmem:[%s1 + $0xc] sm:$0xf]
  %v22 = vld [vmem:[%s1 + $0x10] sm:$0xf]
  %v23 = vld [vmem:[%s1 + $0x14] sm:$0xf]
  %v24 = vld [vmem:[%s1 + $0x18] sm:$0xf]
  %v25 = vld [vmem:[%s1 + $0x1c] sm:$0xf]
  %v26 = vld [vmem:[%s1 + $0x20] sm:$0xf]
  %v27 = vld [vmem:[%s1 + $0x24] sm:$0xf]
  %v28 = vld [vmem:[%s1 + $0x28] sm:$0xf]
  %v29 = vld [vmem:[%s1 + $0x2c] sm:$0xf]
  %v30 = vld [vmem:[%s1 + $0x30] sm:$0xf]
  %v31 = vld [vmem:[%s1 + $0x34] sm:$0xf]
  %v32 = vld [vmem:[%s1 + $0x38] sm:$0xf]
  %v33 = vld [vmem:[%s1 + $0x3c] sm:$0xf]
  %v34 = vld [vmem:[%s0] sm:$0xf]
  %v35 = vld [vmem:[%s0 + $0x4] sm:$0xf]
  %v36 = vld [vmem:[%s0 + $0x8] sm:$0xf]
  %v37 = vld [vmem:[%s0 + $0xc] sm:$0xf]
  %v38 = vld [vmem:[%s2] sm:$0xff]
  %v39 = vld [vmem:[%s2 + $0x8] sm:$0xff]
  %v40 = vld [vmem:[%s2 + $0x10] sm:$0xff]
  %v41 = vld [vmem:[%s2 + $0x18] sm:$0xff]
  %v42 = vld [vmem:[%s2 + $0x20] sm:$0xff]
  %v43 = vld [vmem:[%s2 + $0x28] sm:$0xff]
  %v44 = vld [vmem:[%s2 + $0x30] sm:$0xff]
  %v45 = vld [vmem:[%s2 + $0x38] sm:$0xff]
  %v46 = vld [vmem:[%s2 + $0x40] sm:$0xff]
  %v47 = vld [vmem:[%s2 + $0x48] sm:$0xff]
  %v48 = vld [vmem:[%s2 + $0x50] sm:$0xff]
  %v49 = vld [vmem:[%s2 + $0x58] sm:$0xff]
  %v50 = vld [vmem:[%s2 + $0x60] sm:$0xff]
  %v51 = vld [vmem:[%s2 + $0x68] sm:$0xff]
  %v52 = vld [vmem:[%s2 + $0x70] sm:$0xff]
  %v53 = vld [vmem:[%s2 + $0x78] sm:$0xff]
  %55 = vset.pattern.permute.xlu0 0
  %56 = vperm.xlu0 %55, %v38
  %v57 = vpop.permute.xlu0 %56
  %60 = vset.pattern.permute.xlu0 0
  %61 = vperm.xlu0 %60, %v39
  %v62 = vpop.permute.xlu0 %61
  %65 = vset.pattern.permute.xlu0 0
  %66 = vperm.xlu0 %65, %v40
  %v67 = vpop.permute.xlu0 %66
  %70 = vset.pattern.permute.xlu0 0
  %71 = vperm.xlu0 %70, %v41
  %v72 = vpop.permute.xlu0 %71
  %75 = vset.pattern.permute.xlu0 0
  %76 = vperm.xlu0 %75, %v42
  %v77 = vpop.permute.xlu0 %76
  %80 = vset.pattern.permute.xlu0 0
  %81 = vperm.xlu0 %80, %v43
  %v82 = vpop.permute.xlu0 %81
  %85 = vset.pattern.permute.xlu0 0
  %86 = vperm.xlu0 %85, %v44
  %v87 = vpop.permute.xlu0 %86
  %90 = vset.pattern.permute.xlu0 0
  %91 = vperm.xlu0 %90, %v45
  %v92 = vpop.permute.xlu0 %91
  %95 = vset.pattern.permute.xlu0 0
  %96 = vperm.xlu0 %95, %v46
  %v97 = vpop.permute.xlu0 %96
  %100 = vset.pattern.permute.xlu0 0
  %101 = vperm.xlu0 %100, %v47
  %v102 = vpop.permute.xlu0 %101
  %105 = vset.pattern.permute.xlu0 0
  %106 = vperm.xlu0 %105, %v48
  %v107 = vpop.permute.xlu0 %106
  %110 = vset.pattern.permute.xlu0 0
  %111 = vperm.xlu0 %110, %v49
  %v112 = vpop.permute.xlu0 %111
  %115 = vset.pattern.permute.xlu0 0
  %116 = vperm.xlu0 %115, %v50
  %v117 = vpop.permute.xlu0 %116
  %120 = vset.pattern.permute.xlu0 0
  %121 = vperm.xlu0 %120, %v51
  %v122 = vpop.permute.xlu0 %121
  %125 = vset.pattern.permute.xlu0 0
  %126 = vperm.xlu0 %125, %v52
  %v127 = vpop.permute.xlu0 %126
  %130 = vset.pattern.permute.xlu0 0
  %131 = vperm.xlu0 %130, %v53
  %v132 = vpop.permute.xlu0 %131
  %v150 = vunpack.c.l.b16 %v18
  %v151 = vunpack.c.l.b16 %v19
  %v152 = vunpack.c.l.b16 %v20
  %v153 = vunpack.c.l.b16 %v21
  %v154 = vunpack.c.l.b16 %v22
  %v155 = vunpack.c.l.b16 %v23
  %v156 = vunpack.c.l.b16 %v24
  %v157 = vunpack.c.l.b16 %v25
  %v158 = vunpack.c.l.b16 %v26
  %v159 = vunpack.c.l.b16 %v27
  %v160 = vunpack.c.l.b16 %v28
  %v161 = vunpack.c.l.b16 %v29
  %v162 = vunpack.c.l.b16 %v30
  %v163 = vunpack.c.l.b16 %v31
  %v164 = vunpack.c.l.b16 %v32
  %v165 = vunpack.c.l.b16 %v33
  %v166 = vpack.c.b16 %v151, %v150
  %v167 = vpack.c.b16 %v153, %v152
  %v168 = vpack.c.b16 %v155, %v154
  %v169 = vpack.c.b16 %v157, %v156
  %v170 = vpack.c.b16 %v159, %v158
  %v171 = vpack.c.b16 %v161, %v160
  %v172 = vpack.c.b16 %v163, %v162
  %v173 = vpack.c.b16 %v165, %v164
  %v178 = vunpack.c.l.b16 %v34
  %v179 = vunpack.c.l.b16 %v35
  %v180 = vunpack.c.l.b16 %v36
  %v181 = vunpack.c.l.b16 %v37
  %v182 = vpack.c.b16 %v179, %v178
  %v183 = vpack.c.b16 %v181, %v180
  %vm186 = vcmask 261120
  %v188 = vsel %vm186, %v166, 0
  %v191 = vsel %vm186, %v167, 0
  %v194 = vsel %vm186, %v168, 0
  %v197 = vsel %vm186, %v169, 0
  %v200 = vsel %vm186, %v170, 0
  %v203 = vsel %vm186, %v171, 0
  %v206 = vsel %vm186, %v172, 0
  %v209 = vsel %vm186, %v173, 0
  %211 = vmatpush.bf16.msra.mxu0 0
  %212 = vmatpush.bf16.msra.mxu0 0
  %213 = vmatpush.bf16.msra.mxu0 0
  %214 = vmatpush.bf16.msra.mxu0 0
  %215 = vmatpush.bf16.msra.mxu0 0
  %216 = vmatpush.bf16.msra.mxu0 0
  %217 = vmatpush.bf16.msra.mxu0 %v183
  %218 = vmatpush.bf16.msra.mxu0 %v182
  %219 = vmatmul.bf16.gmra.mxu0 %v188
  %v220 = vpop.f32.mrf.mxu0
  %v221 = vadd.f32 %v57, %v220
  %v222 = vpop.f32.mrf.mxu0
  %v223 = vadd.f32 %v62, %v222
  %224 = vmatmul.bf16.gmra.mxu0 %v191
  %v225 = vpop.f32.mrf.mxu0
  %v226 = vadd.f32 %v67, %v225
  %v227 = vpop.f32.mrf.mxu0
  %v228 = vadd.f32 %v72, %v227
  %229 = vmatmul.bf16.gmra.mxu0 %v194
  %v230 = vpop.f32.mrf.mxu0
  %v231 = vadd.f32 %v77, %v230
  %v232 = vpop.f32.mrf.mxu0
  %v233 = vadd.f32 %v82, %v232
  %234 = vmatmul.bf16.gmra.mxu0 %v197
  %v235 = vpop.f32.mrf.mxu0
  %v236 = vadd.f32 %v87, %v235
  %v237 = vpop.f32.mrf.mxu0
  %v238 = vadd.f32 %v92, %v237
  %239 = vmatmul.bf16.gmra.mxu0 %v200
  %v240 = vpop.f32.mrf.mxu0
  %v241 = vadd.f32 %v97, %v240
  %v242 = vpop.f32.mrf.mxu0
  %v243 = vadd.f32 %v102, %v242
  %244 = vmatmul.bf16.gmra.mxu0 %v203
  %v245 = vpop.f32.mrf.mxu0
  %v246 = vadd.f32 %v107, %v245
  %v247 = vpop.f32.mrf.mxu0
  %v248 = vadd.f32 %v112, %v247
  %249 = vmatmul.bf16.gmra.mxu0 %v206
  %v250 = vpop.f32.mrf.mxu0
  %v251 = vadd.f32 %v117, %v250
  %v252 = vpop.f32.mrf.mxu0
  %v253 = vadd.f32 %v122, %v252
  %254 = vmatmul.bf16.gmra.mxu0 %v209
  %v255 = vpop.f32.mrf.mxu0
  %v256 = vadd.f32 %v127, %v255
  %v257 = vpop.f32.mrf.mxu0
  %v258 = vadd.f32 %v132, %v257
  %259 = vdwg.mxu0
  %v260 = vld [vmem:[%s3] sm:$0xff]
  %v261 = vld [vmem:[%s3 + $0x8] sm:$0xff]
  %v262 = vld [vmem:[%s3 + $0x10] sm:$0xff]
  %v263 = vld [vmem:[%s3 + $0x18] sm:$0xff]
  %v264 = vld [vmem:[%s3 + $0x20] sm:$0xff]
  %v265 = vld [vmem:[%s3 + $0x28] sm:$0xff]
  %v266 = vld [vmem:[%s3 + $0x30] sm:$0xff]
  %v267 = vld [vmem:[%s3 + $0x38] sm:$0xff]
  %v268 = vld [vmem:[%s3 + $0x40] sm:$0xff]
  %v269 = vld [vmem:[%s3 + $0x48] sm:$0xff]
  %v270 = vld [vmem:[%s3 + $0x50] sm:$0xff]
  %v271 = vld [vmem:[%s3 + $0x58] sm:$0xff]
  %v272 = vld [vmem:[%s3 + $0x60] sm:$0xff]
  %v273 = vld [vmem:[%s3 + $0x68] sm:$0xff]
  %v274 = vld [vmem:[%s3 + $0x70] sm:$0xff]
  %v275 = vld [vmem:[%s3 + $0x78] sm:$0xff]
  %v276 = vadd.f32 %v221, %v260
  %v277 = vadd.f32 %v223, %v261
  %v278 = vadd.f32 %v226, %v262
  %v279 = vadd.f32 %v228, %v263
  %v280 = vadd.f32 %v231, %v264
  %v281 = vadd.f32 %v233, %v265
  %v282 = vadd.f32 %v236, %v266
  %v283 = vadd.f32 %v238, %v267
  %v284 = vadd.f32 %v241, %v268
  %v285 = vadd.f32 %v243, %v269
  %v286 = vadd.f32 %v246, %v270
  %v287 = vadd.f32 %v248, %v271
  %v288 = vadd.f32 %v251, %v272
  %v289 = vadd.f32 %v253, %v273
  %v290 = vadd.f32 %v256, %v274
  %v291 = vadd.f32 %v258, %v275
  %v292 = vmax.f32 %v276, %v280
  %v293 = vmax.f32 %v277, %v281
  %v294 = vmax.f32 %v278, %v282
  %v295 = vmax.f32 %v279, %v283
  %v296 = vmax.f32 %v292, %v284
  %v297 = vmax.f32 %v293, %v285
  %v298 = vmax.f32 %v294, %v286
  %v299 = vmax.f32 %v295, %v287
  %v300 = vmax.f32 %v296, %v288
  %v301 = vmax.f32 %v297, %v289
  %v302 = vmax.f32 %v298, %v290
  %v303 = vmax.f32 %v299, %v291
  %v304 = vmax.f32 %v300, %v301
  %v305 = vmax.f32 %v302, %v303
  %v306 = vmax.f32 %v304, %v305
  %v307 = vrot.slane %v306, 4
  %v308 = vmax.f32 %v306, %v307
  %v309 = vrot.slane %v308, 2
  %v310 = vmax.f32 %v308, %v309
  %v311 = vrot.slane %v310, 1
  %v312 = vmax.f32 %v310, %v311
  %v313 = vlaneseq
  %v314 = vshrl.u32 %v313, 7
  %v315 = vadd.s32 %v314, 8
  %v316 = vadd.s32 %v314, 16
  %v317 = vadd.s32 %v314, 24
  %v318 = vadd.s32 %v314, 32
  %v319 = vadd.s32 %v314, 40
  %v320 = vadd.s32 %v314, 48
  %v321 = vadd.s32 %v314, 56
  %v322 = vadd.s32 %v314, 64
  %v323 = vadd.s32 %v314, 72
  %v324 = vadd.s32 %v314, 80
  %v325 = vadd.s32 %v314, 88
  %v326 = vadd.s32 %v314, 96
  %v327 = vadd.s32 %v314, 104
  %v328 = vadd.s32 %v314, 112
  %v329 = vadd.s32 %v314, 120
  %vm330 = vcmp.ge.f32.partialorder %v276, %v312
  %vm331 = vcmp.ge.f32.partialorder %v277, %v312
  %vm332 = vcmp.ge.f32.partialorder %v278, %v312
  %vm333 = vcmp.ge.f32.partialorder %v279, %v312
  %vm334 = vcmp.ge.f32.partialorder %v280, %v312
  %vm335 = vcmp.ge.f32.partialorder %v281, %v312
  %vm336 = vcmp.ge.f32.partialorder %v282, %v312
  %vm337 = vcmp.ge.f32.partialorder %v283, %v312
  %vm338 = vcmp.ge.f32.partialorder %v284, %v312
  %vm339 = vcmp.ge.f32.partialorder %v285, %v312
  %vm340 = vcmp.ge.f32.partialorder %v286, %v312
  %vm341 = vcmp.ge.f32.partialorder %v287, %v312
  %vm342 = vcmp.ge.f32.partialorder %v288, %v312
  %vm343 = vcmp.ge.f32.partialorder %v289, %v312
  %vm344 = vcmp.ge.f32.partialorder %v290, %v312
  %vm345 = vcmp.ge.f32.partialorder %v291, %v312
  %v346 = vsel %vm330, %v314, 128
  %v347 = vsel %vm331, %v315, 128
  %v348 = vsel %vm332, %v316, 128
  %v349 = vsel %vm333, %v317, 128
  %v350 = vsel %vm334, %v318, 128
  %v351 = vsel %vm335, %v319, 128
  %v352 = vsel %vm336, %v320, 128
  %v353 = vsel %vm337, %v321, 128
  %v354 = vsel %vm338, %v322, 128
  %v355 = vsel %vm339, %v323, 128
  %v356 = vsel %vm340, %v324, 128
  %v357 = vsel %vm341, %v325, 128
  %v358 = vsel %vm342, %v326, 128
  %v359 = vsel %vm343, %v327, 128
  %v360 = vsel %vm344, %v328, 128
  %v361 = vsel %vm345, %v329, 128
  %vm362 = vcmp.lt.s32.totalorder %v346, %v350
  %v363 = vsel %vm362, %v346, %v350
  %vm364 = vcmp.lt.s32.totalorder %v347, %v351
  %v365 = vsel %vm364, %v347, %v351
  %vm366 = vcmp.lt.s32.totalorder %v348, %v352
  %v367 = vsel %vm366, %v348, %v352
  %vm368 = vcmp.lt.s32.totalorder %v349, %v353
  %v369 = vsel %vm368, %v349, %v353
  %vm370 = vcmp.lt.s32.totalorder %v363, %v354
  %v371 = vsel %vm370, %v363, %v354
  %vm372 = vcmp.lt.s32.totalorder %v365, %v355
  %v373 = vsel %vm372, %v365, %v355
  %vm374 = vcmp.lt.s32.totalorder %v367, %v356
  %v375 = vsel %vm374, %v367, %v356
  %vm376 = vcmp.lt.s32.totalorder %v369, %v357
  %v377 = vsel %vm376, %v369, %v357
  %vm378 = vcmp.lt.s32.totalorder %v371, %v358
  %v379 = vsel %vm378, %v371, %v358
  %vm380 = vcmp.lt.s32.totalorder %v373, %v359
  %v381 = vsel %vm380, %v373, %v359
  %vm382 = vcmp.lt.s32.totalorder %v375, %v360
  %v383 = vsel %vm382, %v375, %v360
  %vm384 = vcmp.lt.s32.totalorder %v377, %v361
  %v385 = vsel %vm384, %v377, %v361
  %vm386 = vcmp.lt.s32.totalorder %v379, %v381
  %v387 = vsel %vm386, %v379, %v381
  %vm388 = vcmp.lt.s32.totalorder %v383, %v385
  %v389 = vsel %vm388, %v383, %v385
  %vm390 = vcmp.lt.s32.totalorder %v387, %v389
  %v391 = vsel %vm390, %v387, %v389
  %v392 = vrot.slane %v391, 4
  %vm393 = vcmp.lt.s32.totalorder %v391, %v392
  %v394 = vsel %vm393, %v391, %v392
  %v395 = vrot.slane %v394, 2
  %vm396 = vcmp.lt.s32.totalorder %v394, %v395
  %v397 = vsel %vm396, %v394, %v395
  %v398 = vrot.slane %v397, 1
  %vm399 = vcmp.lt.s32.totalorder %v397, %v398
  %v400 = vsel %vm399, %v397, %v398
  %401 = vst [vmem:[%s4] sm:$0x1] %v400
  // Predicated region
  $region18: #{tokenizer_forward.1} parent=0 // pred_check
    _
  $region19: #{tokenizer_forward.1} parent=0 // pred_check_branch
    %403 = sbr.rel (0) target = $region21
  $region20: #{tokenizer_forward.1} parent=0 // pred_region
    _
  $region21: #{tokenizer_forward.1} parent=0 // pred_fallthru
    _
  // Predicated region
  $region22: #{tokenizer_forward.1} parent=0 // pred_check
    _
  $region23: #{tokenizer_forward.1} parent=0 // pred_check_branch
    %405 = sbr.rel (0) target = $region25
  $region24: #{tokenizer_forward.1} parent=0 // pred_region
    _
  $region25: #{tokenizer_forward.1} parent=0 // pred_fallthru
    _

</llo_original>
